<compile_context>
chip_gen: v7x
topology: tpu7x:2x2x1
jax: 0.10.0
libtpu: 0.0.40
codegen_flags: <defaults>
</compile_context>

<pallas_src>
import functools

import jax
import jax.numpy as jnp
from jax import lax
from jax.experimental import pallas as pl
from jax.experimental.pallas import tpu as pltpu


_INT32_MIN = -2147483648
_SIGN_FIX = 2147483647          # 0x7FFFFFFF


def _hnm_rowsum_kernel(x_ref, out_ref, *, k):
    """Exact per-row top-k sum for a (Bt, P) block of the flattened loss."""
    x = x_ref[...].astype(jnp.float32)                 # (Bt, P)

    # Monotone int32 key: signed-int order on `keys` == float order on x.
    keys = pltpu.bitcast(x, jnp.int32)
    keys = jnp.where(keys < 0, keys ^ jnp.int32(_SIGN_FIX), keys)

    kk = jnp.int32(k)

    def count_ge(t):                                   # t: scalar or (Bt,1) int32
        return jnp.sum((keys >= t).astype(jnp.int32), axis=-1, keepdims=True)

    # Bisection for thr = k-th largest key per row, i.e. the largest t with
    # count_ge(t) >= k.  Sign bit is decided first so all later additions stay
    # strictly inside the int32 range (no overflow).
    cnt0 = count_ge(jnp.int32(0))
    thr0 = jnp.where(cnt0 >= kk, jnp.int32(0), jnp.int32(_INT32_MIN))   # (Bt,1)

    def one_step(carry):
        thr, step = carry
        cand = thr + step
        thr = jnp.where(count_ge(cand) >= kk, cand, thr)
        return thr, step >> 1

    # 32 steps total (bits 30..0 plus a final step==0 no-op), unrolled x4 per
    # fori_loop iteration to give the LLO scheduler cross-step visibility.
    def body4(_, carry):
        for _ in range(4):
            carry = one_step(carry)
        return carry

    thr, _ = lax.fori_loop(0, 8, body4, (thr0, jnp.int32(1 << 30)))

    # Decode the k-th largest float value directly from its key bit pattern
    # (thr is attained by construction) -- no extra pass over x, no sentinel.
    v_bits = jnp.where(thr < 0, thr ^ jnp.int32(_SIGN_FIX), thr)
    v_thr = pltpu.bitcast(v_bits, jnp.float32)                          # (Bt,1)

    # Exact top-k sum with tie correction; tie count stays in int32.
    gt = keys > thr
    count_gt = jnp.sum(gt.astype(jnp.int32), axis=-1, keepdims=True)    # (Bt,1) int32
    sum_gt = jnp.sum(jnp.where(gt, x, jnp.float32(0.0)), axis=-1, keepdims=True)
    row_topk_sum = sum_gt + (kk - count_gt).astype(jnp.float32) * v_thr  # (Bt,1)

    # Lane-dense store (unmasked vst); wrapper reads lane 0 of each row.
    out_ref[...] = jnp.broadcast_to(row_topk_sum, out_ref.shape)
    # TODO(synk): optional regime-specific tweaks (MXU count-reduce for huge P,
    # 2-bits-per-pass bisection for tiny P) left out pending per-chip measurement.


def _vmem_capacity_bytes():
    try:
        return int(pltpu.get_tpu_info().vmem_capacity_bytes)
    except Exception:
        return 64 * 1024 * 1024     # conservative fallback (v7x per-core VMEM)


def hard_negative_mining(loss, targets=None, perc=0.25):
    """Pallas equivalent of HardNegativeMining.forward(loss, targets).

    `targets` is accepted for API parity but (as in the PyTorch module) unused.
    """
    del targets  # unused by the reference forward
    B = loss.shape[0]
    if loss.dtype not in (jnp.float32, jnp.bfloat16):
        loss = loss.astype(jnp.float32)
    in_dtype = loss.dtype
    flat = loss.reshape(B, -1)                        # (B, P), like torch .reshape(B, -1)
    P = flat.shape[1]
    k = int(perc * P)
    if k <= 0:
        # torch: topk(k=0).values.mean() -> nan
        return jnp.float32(jnp.nan)

    itemsize = jnp.dtype(in_dtype).itemsize
    row_align = 16 if in_dtype == jnp.bfloat16 else 8
    B_aligned = ((B + row_align - 1) // row_align) * row_align

    # --- VMEM-aware Bt selection --------------------------------------------
    # Working set per row: double-buffered input block (2*itemsize/elt) plus the
    # in-kernel f32 copy and the int32 keys held across the bisection (8 B/elt).
    vmem = _vmem_capacity_bytes()
    budget = int(vmem * 0.70)
    bytes_per_row = P * (2 * itemsize + 8)
    bt_cap = max(row_align,
                 (budget // max(bytes_per_row, 1)) // row_align * row_align)
    Bt = min(bt_cap, B_aligned)
    # Keep >= 2 disjoint output blocks when the batch allows it so the
    # "parallel" grid axis can shard across v7x's two TensorCores.
    if B_aligned >= 2 * row_align:
        Bt = min(Bt, max(row_align, (B_aligned // 2) // row_align * row_align))
    # Huge-P fallback: drop the input to single buffering instead of shrinking
    # below one aligned row group (compute-bound, exposed DMA is cheap).
    single_buffer = bytes_per_row * Bt > budget

    B_pad = ((B + Bt - 1) // Bt) * Bt
    if B_pad != B:
        flat = jnp.pad(flat, ((0, B_pad - B), (0, 0)))
    num_blocks = B_pad // Bt

    if single_buffer:
        in_spec = pl.BlockSpec((Bt, P), lambda i: (i, 0),
                               pipeline_mode=pl.Buffered(1))
    else:
        in_spec = pl.BlockSpec((Bt, P), lambda i: (i, 0))

    row_sums = pl.pallas_call(
        functools.partial(_hnm_rowsum_kernel, k=k),
        out_shape=jax.ShapeDtypeStruct((B_pad, 128), jnp.float32),
        grid_spec=pltpu.PrefetchScalarGridSpec(
            num_scalar_prefetch=0,
            grid=(num_blocks,),
            in_specs=[in_spec],
            out_specs=pl.BlockSpec((Bt, 128), lambda i: (i, 0)),
        ),
        compiler_params=pltpu.CompilerParams(
            dimension_semantics=("parallel",),        # disjoint row blocks -> megacore OK
            vmem_limit_bytes=int(vmem * 0.90)),
        cost_estimate=pl.CostEstimate(
            flops=35 * 3 * B_pad * P,                 # ~35 full passes, ~3 VALU ops/elt
            transcendentals=0,
            bytes_accessed=B_pad * P * itemsize + B_pad * 128 * 4),
    )(flat)

    # mean over all B*k selected values (padded rows contribute exactly 0).
    return jnp.sum(row_sums[:B, 0]) / jnp.float32(B * k)


if __name__ == "__main__":
    key = jax.random.PRNGKey(0)
    k1, k2 = jax.random.split(key)

    B, H, W = 2, 16, 16
    perc = 0.25

    loss = jax.random.uniform(k1, (B, H, W), dtype=jnp.float32)
    targets = jax.random.randint(k2, (B, H, W), 0, 21)   # unused, API parity only

    result = jax.block_until_ready(hard_negative_mining(loss, targets, perc=perc))

    # Pure-JAX reference (mirrors the PyTorch forward).
    flat = loss.reshape(B, -1)
    P = flat.shape[1]
    kk = int(perc * P)
    ref = jnp.mean(jnp.sort(flat, axis=1)[:, ::-1][:, :kk])

    assert jnp.allclose(result, ref, rtol=1e-5, atol=1e-5), (result, ref)
    print("KERNEL_OK")
</pallas_src>

<mosaic_0001>
module attributes {stable_mosaic.version = 11 : i64} {
  func.func @_hnm_rowsum_kernel(%arg0: i32, %arg1: memref<8x256xf32, #tpu.memory_space<vmem>>, %arg2: memref<8x128xf32, #tpu.memory_space<vmem>>) attributes {dimension_semantics = [#tpu.dimension_semantics<parallel>], iteration_bounds = array<i64: 1>, scalar_prefetch = 0 : i64, scratch_operands = 0 : i64, tpu.core_type = #tpu.core_type<tc>, window_params = [{transform_indices = @transform_0, window_bounds = array<i64: 8, 256>}, {transform_indices = @transform_1, window_bounds = array<i64: 8, 128>}]} {
    %c0 = arith.constant 0 : index
    %c0_0 = arith.constant 0 : index
    %0 = vector.load %arg1[%c0, %c0_0] : memref<8x256xf32, #tpu.memory_space<vmem>>, vector<8x256xf32>
    %1 = tpu.bitcast %0 : vector<8x256xf32> -> vector<8x256xi32>
    %c0_i32 = arith.constant 0 : i32
    %2 = vector.broadcast %c0_i32 : i32 to vector<8x256xi32>
    %3 = arith.cmpi slt, %1, %2 : vector<8x256xi32>
    %c2147483647_i32 = arith.constant 2147483647 : i32
    %4 = vector.broadcast %c2147483647_i32 : i32 to vector<8x256xi32>
    %5 = arith.xori %1, %4 : vector<8x256xi32>
    %6 = arith.select %3, %5, %1 : vector<8x256xi1>, vector<8x256xi32>
    %c0_i32_1 = arith.constant 0 : i32
    %7 = vector.broadcast %c0_i32_1 : i32 to vector<8x256xi32>
    %8 = arith.cmpi sge, %6, %7 : vector<8x256xi32>
    %9 = arith.extui %8 : vector<8x256xi1> to vector<8x256xi32>
    %cst = arith.constant dense<0> : vector<8xi32>
    %10 = vector.multi_reduction <add>, %9, %cst [1] : vector<8x256xi32> to vector<8xi32>
    %11 = vector.shape_cast %10 : vector<8xi32> to vector<8x1xi32>
    %c64_i32 = arith.constant 64 : i32
    %12 = vector.broadcast %c64_i32 : i32 to vector<8x1xi32>
    %13 = arith.cmpi sge, %11, %12 : vector<8x1xi32>
    %c0_i32_2 = arith.constant 0 : i32
    %c-2147483648_i32 = arith.constant -2147483648 : i32
    %14 = vector.broadcast %c0_i32_2 : i32 to vector<8x1xi32>
    %15 = vector.broadcast %c-2147483648_i32 : i32 to vector<8x1xi32>
    %16 = arith.select %13, %14, %15 : vector<8x1xi1>, vector<8x1xi32>
    %c64_i32_3 = arith.constant 64 : i32
    %c1073741824_i32 = arith.constant 1073741824 : i32
    %c0_i32_4 = arith.constant 0 : i32
    %c8_i32 = arith.constant 8 : i32
    %17 = arith.addi %c0_i32_4, %c8_i32 : i32
    %c1_i32 = arith.constant 1 : i32
    %18:2 = scf.for %arg3 = %c0_i32_4 to %17 step %c1_i32 iter_args(%arg4 = %16, %arg5 = %c1073741824_i32) -> (vector<8x1xi32>, i32)  : i32 {
      %42 = vector.broadcast %arg5 : i32 to vector<8x1xi32>
      %43 = arith.addi %arg4, %42 : vector<8x1xi32>
      %44 = vector.broadcast %43 : vector<8x1xi32> to vector<8x256xi32>
      %45 = arith.cmpi sge, %6, %44 : vector<8x256xi32>
      %46 = arith.extui %45 : vector<8x256xi1> to vector<8x256xi32>
      %cst_13 = arith.constant dense<0> : vector<8xi32>
      %47 = vector.multi_reduction <add>, %46, %cst_13 [1] : vector<8x256xi32> to vector<8xi32>
      %48 = vector.shape_cast %47 : vector<8xi32> to vector<8x1xi32>
      %49 = vector.broadcast %c64_i32_3 : i32 to vector<8x1xi32>
      %50 = arith.cmpi sge, %48, %49 : vector<8x1xi32>
      %51 = arith.select %50, %43, %arg4 : vector<8x1xi1>, vector<8x1xi32>
      %c1_i32_14 = arith.constant 1 : i32
      %52 = arith.shrsi %arg5, %c1_i32_14 : i32
      %53 = vector.broadcast %52 : i32 to vector<8x1xi32>
      %54 = arith.addi %51, %53 : vector<8x1xi32>
      %55 = vector.broadcast %54 : vector<8x1xi32> to vector<8x256xi32>
      %56 = arith.cmpi sge, %6, %55 : vector<8x256xi32>
      %57 = arith.extui %56 : vector<8x256xi1> to vector<8x256xi32>
      %cst_15 = arith.constant dense<0> : vector<8xi32>
      %58 = vector.multi_reduction <add>, %57, %cst_15 [1] : vector<8x256xi32> to vector<8xi32>
      %59 = vector.shape_cast %58 : vector<8xi32> to vector<8x1xi32>
      %60 = vector.broadcast %c64_i32_3 : i32 to vector<8x1xi32>
      %61 = arith.cmpi sge, %59, %60 : vector<8x1xi32>
      %62 = arith.select %61, %54, %51 : vector<8x1xi1>, vector<8x1xi32>
      %c1_i32_16 = arith.constant 1 : i32
      %63 = arith.shrsi %52, %c1_i32_16 : i32
      %64 = vector.broadcast %63 : i32 to vector<8x1xi32>
      %65 = arith.addi %62, %64 : vector<8x1xi32>
      %66 = vector.broadcast %65 : vector<8x1xi32> to vector<8x256xi32>
      %67 = arith.cmpi sge, %6, %66 : vector<8x256xi32>
      %68 = arith.extui %67 : vector<8x256xi1> to vector<8x256xi32>
      %cst_17 = arith.constant dense<0> : vector<8xi32>
      %69 = vector.multi_reduction <add>, %68, %cst_17 [1] : vector<8x256xi32> to vector<8xi32>
      %70 = vector.shape_cast %69 : vector<8xi32> to vector<8x1xi32>
      %71 = vector.broadcast %c64_i32_3 : i32 to vector<8x1xi32>
      %72 = arith.cmpi sge, %70, %71 : vector<8x1xi32>
      %73 = arith.select %72, %65, %62 : vector<8x1xi1>, vector<8x1xi32>
      %c1_i32_18 = arith.constant 1 : i32
      %74 = arith.shrsi %63, %c1_i32_18 : i32
      %75 = vector.broadcast %74 : i32 to vector<8x1xi32>
      %76 = arith.addi %73, %75 : vector<8x1xi32>
      %77 = vector.broadcast %76 : vector<8x1xi32> to vector<8x256xi32>
      %78 = arith.cmpi sge, %6, %77 : vector<8x256xi32>
      %79 = arith.extui %78 : vector<8x256xi1> to vector<8x256xi32>
      %cst_19 = arith.constant dense<0> : vector<8xi32>
      %80 = vector.multi_reduction <add>, %79, %cst_19 [1] : vector<8x256xi32> to vector<8xi32>
      %81 = vector.shape_cast %80 : vector<8xi32> to vector<8x1xi32>
      %82 = vector.broadcast %c64_i32_3 : i32 to vector<8x1xi32>
      %83 = arith.cmpi sge, %81, %82 : vector<8x1xi32>
      %84 = arith.select %83, %76, %73 : vector<8x1xi1>, vector<8x1xi32>
      %c1_i32_20 = arith.constant 1 : i32
      %85 = arith.shrsi %74, %c1_i32_20 : i32
      scf.yield %84, %85 : vector<8x1xi32>, i32
    }
    %c0_i32_5 = arith.constant 0 : i32
    %19 = vector.broadcast %c0_i32_5 : i32 to vector<8x1xi32>
    %20 = arith.cmpi slt, %18#0, %19 : vector<8x1xi32>
    %c2147483647_i32_6 = arith.constant 2147483647 : i32
    %21 = vector.broadcast %c2147483647_i32_6 : i32 to vector<8x1xi32>
    %22 = arith.xori %18#0, %21 : vector<8x1xi32>
    %23 = arith.select %20, %22, %18#0 : vector<8x1xi1>, vector<8x1xi32>
    %24 = tpu.bitcast %23 : vector<8x1xi32> -> vector<8x1xf32>
    %25 = vector.broadcast %18#0 : vector<8x1xi32> to vector<8x256xi32>
    %26 = arith.cmpi sgt, %6, %25 : vector<8x256xi32>
    %27 = arith.extui %26 : vector<8x256xi1> to vector<8x256xi32>
    %cst_7 = arith.constant dense<0> : vector<8xi32>
    %28 = vector.multi_reduction <add>, %27, %cst_7 [1] : vector<8x256xi32> to vector<8xi32>
    %29 = vector.shape_cast %28 : vector<8xi32> to vector<8x1xi32>
    %cst_8 = arith.constant 0.000000e+00 : f32
    %30 = vector.broadcast %cst_8 : f32 to vector<8x256xf32>
    %31 = arith.select %26, %0, %30 : vector<8x256xi1>, vector<8x256xf32>
    %cst_9 = arith.constant dense<0.000000e+00> : vector<8xf32>
    %32 = vector.multi_reduction <add>, %31, %cst_9 [1] : vector<8x256xf32> to vector<8xf32>
    %33 = vector.shape_cast %32 : vector<8xf32> to vector<8x1xf32>
    %c64_i32_10 = arith.constant 64 : i32
    %34 = vector.broadcast %c64_i32_10 : i32 to vector<8x1xi32>
    %35 = arith.subi %34, %29 : vector<8x1xi32>
    %36 = arith.sitofp %35 : vector<8x1xi32> to vector<8x1xf32>
    %37 = arith.mulf %36, %24 : vector<8x1xf32>
    %38 = arith.addf %33, %37 : vector<8x1xf32>
    %39 = vector.shape_cast %38 : vector<8x1xf32> to vector<8x1xf32>
    %40 = vector.broadcast %39 : vector<8x1xf32> to vector<8x128xf32>
    %c0_11 = arith.constant 0 : index
    %c0_12 = arith.constant 0 : index
    %41 = vector.load %arg2[%c0_11, %c0_12] : memref<8x128xf32, #tpu.memory_space<vmem>>, vector<8x128xf32>
    tpu.vector_store %arg2[%c0_11, %c0_12], %40 {strides = array<i32>} : memref<8x128xf32, #tpu.memory_space<vmem>>, vector<8x128xf32>,
    return
  }
  func.func @transform_0(%arg0: i32) -> (i32, i32) {
    %c0_i32 = arith.constant 0 : i32
    %c0_i32_0 = arith.constant 0 : i32
    return %arg0, %c0_i32 : i32, i32
  }
  func.func @transform_1(%arg0: i32) -> (i32, i32) {
    %c0_i32 = arith.constant 0 : i32
    %c0_i32_0 = arith.constant 0 : i32
    return %arg0, %c0_i32 : i32, i32
  }
}

</mosaic_0001>

<llo_original>
// kernel: tpu_custom_call.1
$region0: #{tpu_custom_call.1}
  #allocation0 [shape = 'u32[]', space=smem, size = 0x4, offset = 0x4, fixed_abs, tag = 'smem constant byte address 0x4 - core index']
  #allocation1 [shape = 'u32[144,128]{1,0:T(1,128)}', space=vmem, size = 0x12000, scoped, tag = 'internal scratch']
  %s0 = inlined_call_operand.hbm [shape: f32[8,256], index: 0, kind: input, shape index: {}]
  %s1 = inlined_call_operand.hbm [shape: f32[8,128], index: 1, kind: output, shape index: {}]
  %s2 = sld [smem:[#allocation0]]
  $region25: #{tpu_custom_call.1} parent=0
    _
  %s4 = ssub.s32 1, %s2
  %s5 = scalar_select 0, %s4, %s2
  $region1: #{tpu_custom_call.1} parent=0
    #allocation2 [shape = 'u8[8192]{0}', space=vmem, size = 0x2000, scoped, tag = 'input window, operand 0, single buffered']
    #allocation3 [shape = 's32[1]{0}', space=sflag, size = 0x4, scoped, tag = 'scoped memory for tpu_custom_call.1']
    #allocation4 [shape = 's32[1]{0}', space=sflag, size = 0x4, scoped, tag = 'scoped memory for tpu_custom_call.1']
    #allocation5 [shape = 'u8[4096]{0}', space=vmem, size = 0x1000, scoped, tag = 'output window, operand 0, single buffered']
    %6 = vsyncpa [#allocation3], 0
    %7 = vsyncpa [#allocation4], 0
    // Predicated region
    $region2: #{tpu_custom_call.1} parent=1 // pred_check
      _
    $region3: #{tpu_custom_call.1} parent=1 // pred_check_branch
      %9 = sbr.rel (0) target = $region5
    $region4: #{tpu_custom_call.1} parent=1 // pred_region
      %s11 = ssub.s32 256, 256
      %12 = vsyncadd [#allocation3], %s11
      %s14 = sshll.u32 [#allocation2], 4
      %s15 = int_to_ptr.vmem [resolvable:$true] %s14
      %17 = dma.hbm_to_vmem [thread:$0]  %s0, 256, %s15, [#allocation3]
    $region5: #{tpu_custom_call.1} parent=1 // pred_fallthru
      _
    // Predicated region
    $region6: #{tpu_custom_call.1} parent=1 // pred_check
      _
    $region7: #{tpu_custom_call.1} parent=1 // pred_check_branch
      %19 = sbr.rel (0) target = $region9
    $region8: #{tpu_custom_call.1} parent=1 // pred_region
      %20 = dma.done [#allocation3], 256
    $region9: #{tpu_custom_call.1} parent=1 // pred_fallthru
      _
    %v21 = vld [vmem:[#allocation2] sm:$0xff]
    %v22 = vld [vmem:[#allocation2 + $0x8] sm:$0xff]
    %vm25 = vcmp.lt.s32.totalorder %v21, 0
    %vm26 = vcmp.lt.s32.totalorder %v22, 0
    %v27 = vxor.u32 %v21, 2147483647
    %v28 = vxor.u32 %v22, 2147483647
    %v29 = vsel %vm25, %v27, %v21
    %v30 = vsel %vm26, %v28, %v22
    %vm31 = vcmp.ge.s32.totalorder %v29, 0
    %vm32 = vcmp.ge.s32.totalorder %v30, 0
    %v33 = vsel %vm31, 1, 0
    %v34 = vsel %vm32, 1, 0
    %v35 = vadd.s32 %v33, %v34
    %v36 = vand.u32 %v35, 65535
    %v37 = vshrl.u32 %v35, 16
    %v38 = vcvt.s32.f32 %v36
    %v39 = vcvt.s32.f32 %v37
    %40 = vadd.xlane.f32.xlu0 %v38
    %v41 = vpop.xlane.xlu0 %40
    %42 = vadd.xlane.f32.xlu0 %v39
    %v43 = vpop.xlane.xlu0 %42
    %v44 = vcvt.f32.s32 %v41
    %v45 = vcvt.f32.s32 %v43
    %v46 = vshll.u32 %v45, 16
    %v47 = vadd.s32 %v46, %v44
    %vm48 = vcmp.ge.s32.totalorder %v47, 64
    %v49 = vsel %vm48, 0, 2147483648
    loop: start=0, step=1, limit=8
    $region10: #{tpu_custom_call.1} parent=1 // loop_pre_header
      _
    $region11: #{tpu_custom_call.1} parent=1 // loop_header
      %s51 = sphi 0, %s55
      %p52 = scmp.ge.s32.totalorder %s51, 8
      %v56 = vphi %v49, %v144
      %s57 = sphi 1073741824, %s145
    $region12: #{tpu_custom_call.1} parent=1 // loop_header_branch
      %54 = sbr.rel (%p52) target = $region16
    $region13: #{tpu_custom_call.1} parent=1 // loop_body
      %v58 = vstv %s57
      %v59 = vadd.s32 %v56, %v58
      %vm60 = vcmp.ge.s32.totalorder %v29, %v59
      %vm61 = vcmp.ge.s32.totalorder %v30, %v59
      %v62 = vsel %vm60, 1, 0
      %v63 = vsel %vm61, 1, 0
      %v64 = vadd.s32 %v62, %v63
      %v65 = vand.u32 %v64, 65535
      %v66 = vshrl.u32 %v64, 16
      %v67 = vcvt.s32.f32 %v65
      %v68 = vcvt.s32.f32 %v66
      %69 = vadd.xlane.f32.xlu0 %v67
      %v70 = vpop.xlane.xlu0 %69
      %71 = vadd.xlane.f32.xlu0 %v68
      %v72 = vpop.xlane.xlu0 %71
      %v73 = vcvt.f32.s32 %v70
      %v74 = vcvt.f32.s32 %v72
      %v75 = vshll.u32 %v74, 16
      %v76 = vadd.s32 %v75, %v73
      %vm77 = vcmp.ge.s32.totalorder %v76, 64
      %v78 = vsel %vm77, %v59, %v56
      %s79 = sshra.s32 %s57, 1
      %v80 = vstv %s79
      %v81 = vadd.s32 %v78, %v80
      %vm82 = vcmp.ge.s32.totalorder %v29, %v81
      %vm83 = vcmp.ge.s32.totalorder %v30, %v81
      %v84 = vsel %vm82, 1, 0
      %v85 = vsel %vm83, 1, 0
      %v86 = vadd.s32 %v84, %v85
      %v87 = vand.u32 %v86, 65535
      %v88 = vshrl.u32 %v86, 16
      %v89 = vcvt.s32.f32 %v87
      %v90 = vcvt.s32.f32 %v88
      %91 = vadd.xlane.f32.xlu0 %v89
      %v92 = vpop.xlane.xlu0 %91
      %93 = vadd.xlane.f32.xlu0 %v90
      %v94 = vpop.xlane.xlu0 %93
      %v95 = vcvt.f32.s32 %v92
      %v96 = vcvt.f32.s32 %v94
      %v97 = vshll.u32 %v96, 16
      %v98 = vadd.s32 %v97, %v95
      %vm99 = vcmp.ge.s32.totalorder %v98, 64
      %v100 = vsel %vm99, %v81, %v78
      %s101 = sshra.s32 %s79, 1
      %v102 = vstv %s101
      %v103 = vadd.s32 %v100, %v102
      %vm104 = vcmp.ge.s32.totalorder %v29, %v103
      %vm105 = vcmp.ge.s32.totalorder %v30, %v103
      %v106 = vsel %vm104, 1, 0
      %v107 = vsel %vm105, 1, 0
      %v108 = vadd.s32 %v106, %v107
      %v109 = vand.u32 %v108, 65535
      %v110 = vshrl.u32 %v108, 16
      %v111 = vcvt.s32.f32 %v109
      %v112 = vcvt.s32.f32 %v110
      %113 = vadd.xlane.f32.xlu0 %v111
      %v114 = vpop.xlane.xlu0 %113
      %115 = vadd.xlane.f32.xlu0 %v112
      %v116 = vpop.xlane.xlu0 %115
      %v117 = vcvt.f32.s32 %v114
      %v118 = vcvt.f32.s32 %v116
      %v119 = vshll.u32 %v118, 16
      %v120 = vadd.s32 %v119, %v117
      %vm121 = vcmp.ge.s32.totalorder %v120, 64
      %v122 = vsel %vm121, %v103, %v100
      %s123 = sshra.s32 %s101, 1
      %v124 = vstv %s123
      %v125 = vadd.s32 %v122, %v124
      %vm126 = vcmp.ge.s32.totalorder %v29, %v125
      %vm127 = vcmp.ge.s32.totalorder %v30, %v125
      %v128 = vsel %vm126, 1, 0
      %v129 = vsel %vm127, 1, 0
      %v130 = vadd.s32 %v128, %v129
      %v131 = vand.u32 %v130, 65535
      %v132 = vshrl.u32 %v130, 16
      %v133 = vcvt.s32.f32 %v131
      %v134 = vcvt.s32.f32 %v132
      %135 = vadd.xlane.f32.xlu0 %v133
      %v136 = vpop.xlane.xlu0 %135
      %137 = vadd.xlane.f32.xlu0 %v134
      %v138 = vpop.xlane.xlu0 %137
      %v139 = vcvt.f32.s32 %v136
      %v140 = vcvt.f32.s32 %v138
      %v141 = vshll.u32 %v140, 16
      %v142 = vadd.s32 %v141, %v139
      %vm143 = vcmp.ge.s32.totalorder %v142, 64
      %v144 = vsel %vm143, %v125, %v122
      %s145 = sshra.s32 %s123, 1
    $region14: #{tpu_custom_call.1} parent=1 // loop_footer
      %s55 = sadd.s32 1, %s51
    $region15: #{tpu_custom_call.1} parent=1 // loop_footer_branch
      %50 = sbr.rel target = $region11
    $region16: #{tpu_custom_call.1} parent=1 // loop_exit
      _
    %vm146 = vcmp.lt.s32.totalorder %v56, 0
    %v147 = vxor.u32 %v56, 2147483647
    %v148 = vsel %vm146, %v147, %v56
    %vm150 = vcmp.gt.s32.totalorder %v29, %v56
    %vm151 = vcmp.gt.s32.totalorder %v30, %v56
    %v152 = vsel %vm150, 1, 0
    %v153 = vsel %vm151, 1, 0
    %v154 = vadd.s32 %v152, %v153
    %v155 = vand.u32 %v154, 65535
    %v156 = vshrl.u32 %v154, 16
    %v157 = vcvt.s32.f32 %v155
    %v158 = vcvt.s32.f32 %v156
    %159 = vadd.xlane.f32.xlu0 %v157
    %v160 = vpop.xlane.xlu0 %159
    %161 = vadd.xlane.f32.xlu0 %v158
    %v162 = vpop.xlane.xlu0 %161
    %v163 = vcvt.f32.s32 %v160
    %v164 = vcvt.f32.s32 %v162
    %v165 = vshll.u32 %v164, 16
    %v166 = vadd.s32 %v165, %v163
    %v167 = vsel %vm150, %v21, 0.0
    %v168 = vsel %vm151, %v22, 0.0
    %v169 = vadd.f32 %v167, %v168
    %170 = vadd.xlane.f32.xlu0 %v169
    %v171 = vpop.xlane.xlu0 %170
    %v172 = vsub.s32 64, %v166
    %v173 = vcvt.s32.f32 %v172
    %v174 = vmul.f32 %v173, %v148
    %v175 = vadd.f32 %v171, %v174
    %176 = vst [vmem:[#allocation5] sm:$0xff] %v175
    // Predicated region
    $region17: #{tpu_custom_call.1} parent=1 // pred_check
      _
    $region18: #{tpu_custom_call.1} parent=1 // pred_check_branch
      %178 = sbr.rel (0) target = $region20
    $region19: #{tpu_custom_call.1} parent=1 // pred_region
      %s180 = ssub.s32 128, 128
      %181 = vsyncadd [#allocation4], %s180
      %s183 = sshll.u32 [#allocation5], 4
      %s184 = int_to_ptr.vmem [resolvable:$true] %s183
      %186 = dma.vmem_to_hbm [thread:$0]  %s184, 128, %s1, [#allocation4]
    $region20: #{tpu_custom_call.1} parent=1 // pred_fallthru
      _
    // Predicated region
    $region21: #{tpu_custom_call.1} parent=1 // pred_check
      _
    $region22: #{tpu_custom_call.1} parent=1 // pred_check_branch
      %188 = sbr.rel (0) target = $region24
    $region23: #{tpu_custom_call.1} parent=1 // pred_region
      %189 = dma.done [#allocation4], 128
    $region24: #{tpu_custom_call.1} parent=1 // pred_fallthru
      _
    %190 = vsyncpa [#allocation3], 1
    %191 = vsyncpa [#allocation4], 1

</llo_original>
